<compile_context>
chip_gen: v5e
topology: v5e:2x2
jax: 0.10.0
libtpu: 0.0.40
codegen_flags: <defaults>
</compile_context>

<pallas_src>
import functools

import numpy as np
import jax
import jax.numpy as jnp
from jax import lax
from jax.experimental import pallas as pl
from jax.experimental.pallas import tpu as pltpu


def _make_shift_expand(n_in: int, tap: int) -> np.ndarray:
    """Matrix M (2*n_in, n_in): (M @ v)[o] = v[(o + tap - 1)//2] of the 2x
    nearest-upsampled, zero-padded (pad=1) signal, for conv tap offset `tap`."""
    n_out = 2 * n_in
    M = np.zeros((n_out, n_in), np.float32)
    for o in range(n_out):
        s = o + tap - 1  # index into the (unpadded) upsampled signal
        if 0 <= s < n_out:
            M[o, s // 2] = 1.0
    return M


def _upsample_conv3x3_kernel(nb, precision, x_ref, bw_hbm, a_hbm, brow_ref,
                             o_ref, bw_vmem, a_vmem, dma_sems):
    # x_ref   : (Nb*H, C*W)     VMEM  rows=(b,h), lanes=(ci,jx)
    # bw_hbm  : (C*W, 3*L)      HBM   weight-folded column operator, lanes=(dy,co,ox)
    # a_hbm   : (3, 2H, H)      HBM   row shift operator per dy tap ({0,1})
    # brow_ref: (1, L)          VMEM  bias repeated over ox (f32)
    # o_ref   : (Nb*2H, L)      VMEM  rows=(b,oy), lanes=(co,ox)  -- lane-dense
    # bw_vmem, a_vmem           VMEM  single-buffered staging scratch
    # dma_sems: (2,)            DMA semaphores
    h2, h = a_vmem.shape[1], a_vmem.shape[2]
    l = o_ref.shape[1]

    # Stage the grid-invariant operators into single-buffered VMEM scratch.
    # The grid has at most 2 steps, so this runs at most once per TensorCore.
    cp_bw = pltpu.make_async_copy(bw_hbm, bw_vmem, dma_sems.at[0])
    cp_a = pltpu.make_async_copy(a_hbm, a_vmem, dma_sems.at[1])
    cp_bw.start()
    cp_a.start()
    cp_bw.wait()
    cp_a.wait()

    # Column pass + dx taps + channel mix for all Nb batch elements in ONE MXU
    # push: (Nb*H, C*W) @ (C*W, 3*L) -> (Nb*H, 3*L), f32 accumulation.
    m = jnp.dot(x_ref[...], bw_vmem[...], precision=precision,
                preferred_element_type=jnp.float32)
    m = m.astype(bw_vmem.dtype)  # back to compute dtype for the row-pass push
    brow = brow_ref[...]         # (1, L) f32

    # Row pass + dy-tap accumulation.  All slices below are sublane(8)/lane(128)
    # aligned -> pure vreg selection, no concatenate / data movement.
    for b in range(nb):          # static unroll; Nb is small by construction
        y = jnp.zeros((h2, l), jnp.float32)
        for dy in range(3):
            y = y + jnp.dot(
                a_vmem[dy], m[b * h:(b + 1) * h, dy * l:(dy + 1) * l],
                precision=precision, preferred_element_type=jnp.float32)
        o_ref[b * h2:(b + 1) * h2, :] = (y + brow).astype(o_ref.dtype)


def upsample2d_forward(x: jax.Array, weight: jax.Array, bias: jax.Array,
                       *, compute_dtype=jnp.bfloat16) -> jax.Array:
    """x: (N, C, H, W); weight: (Cout, C, 3, 3); bias: (Cout,).
    Returns (N, Cout, 2H, 2W) = Conv3x3(pad=1)(nearest_upsample_2x(x)) + bias."""
    N, C, H, W = x.shape
    Cout = weight.shape[0]
    assert weight.shape == (Cout, C, 3, 3)
    assert bias.shape == (Cout,)
    L = Cout * 2 * W  # output lane width per batch element

    # Lane/sublane alignment this kernel is specialized for (unmasked 128-wide
    # stores and view-only slicing in the kernel).
    assert L % 128 == 0, f"Cout*2*W = {L} must be a multiple of 128"
    assert H % 8 == 0, f"H = {H} must be a multiple of 8"

    precision = None if compute_dtype == jnp.bfloat16 else lax.Precision.HIGHEST

    # ---- grid / per-step batch blocking ------------------------------------
    # Fold Nb batch elements into matmul 1's M dim; keep exactly 2 grid steps
    # when N is even so ("parallel",) spreads work over both v7x TensorCores.
    nb = N if N < 2 else max(1, N // 2)
    nb = min(nb, max(1, 4096 // (2 * H)))     # bound the per-step output block
    while N % nb != 0:
        nb -= 1
    num_steps = N // nb

    # ---- constant operators (built exactly in f32, cast once) --------------
    A = np.stack([_make_shift_expand(H, t) for t in range(3)])     # (3, 2H, H)
    Bt = np.stack([_make_shift_expand(W, t).T for t in range(3)])  # (3, W, 2W)
    a_ops = jnp.asarray(A, dtype=compute_dtype)                    # {0,1}: exact

    # bw[(ci,jx), (dy,co,ox)] = sum_dx w[co,ci,dy,dx] * Bt[dx][jx,ox]
    w = weight.astype(jnp.float32)
    bw = jnp.einsum('oidx,xjp->ijdop', w, jnp.asarray(Bt))         # (C,W,3,Cout,2W)
    bw_cat = bw.reshape(C * W, 3 * L).astype(compute_dtype)

    # Bias, pre-broadcast to one lane-dense row (kept f32, added post-accum).
    b_row = jnp.repeat(bias.astype(jnp.float32), 2 * W).reshape(1, L)

    # Input relayout: (N,C,H,W) -> rows=(b,h), lanes=(ci,jx).
    x_l = jnp.transpose(x, (0, 2, 1, 3)).reshape(N * H, C * W).astype(compute_dtype)

    itemsize = jnp.dtype(compute_dtype).itemsize
    flops = 2 * N * H * (C * W) * (3 * L) + 2 * N * 3 * (2 * H) * H * L
    bytes_accessed = int(x_l.size * itemsize + L * 4 + N * 2 * H * L * 4
                         + num_steps * (bw_cat.size + a_ops.size) * itemsize)

    kernel = functools.partial(_upsample_conv3x3_kernel, nb, precision)

    out = pl.pallas_call(
        kernel,
        out_shape=jax.ShapeDtypeStruct((N * 2 * H, L), x.dtype),
        grid=(num_steps,),
        in_specs=[
            pl.BlockSpec((nb * H, C * W), lambda n: (n, 0)),
            pl.BlockSpec(memory_space=pl.ANY),   # BW: staged to VMEM scratch
            pl.BlockSpec(memory_space=pl.ANY),   # A : staged to VMEM scratch
            pl.BlockSpec((1, L), lambda n: (0, 0)),
        ],
        out_specs=pl.BlockSpec((nb * 2 * H, L), lambda n: (n, 0)),
        scratch_shapes=[
            pltpu.VMEM((C * W, 3 * L), compute_dtype),
            pltpu.VMEM((3, 2 * H, H), compute_dtype),
            pltpu.SemaphoreType.DMA((2,)),
        ],
        compiler_params=pltpu.CompilerParams(
            dimension_semantics=("parallel",),
            vmem_limit_bytes=32 * 1024 * 1024,   # v5e scoped default is 16 MiB
        ),
        cost_estimate=pl.CostEstimate(
            flops=flops, transcendentals=0, bytes_accessed=bytes_accessed),
    )(x_l, bw_cat, a_ops, b_row)

    # (N*2H, Cout*2W) -> (N, Cout, 2H, 2W).
    return jnp.transpose(out.reshape(N, 2 * H, Cout, 2 * W), (0, 2, 1, 3))


upsample2d_forward_jit = jax.jit(upsample2d_forward,
                                 static_argnames=("compute_dtype",))


if __name__ == "__main__":
    key = jax.random.PRNGKey(0)
    kx, kw, kb = jax.random.split(key, 3)

    N, C, H, W = 2, 4, 16, 16
    Cout = C  # out_channels defaults to channels

    x = jax.random.normal(kx, (N, C, H, W), jnp.float32)
    weight = jax.random.normal(kw, (Cout, C, 3, 3), jnp.float32) * 0.1
    bias = jax.random.normal(kb, (Cout,), jnp.float32) * 0.1

    out = jax.block_until_ready(upsample2d_forward_jit(x, weight, bias))
    assert out.shape == (N, Cout, 2 * H, 2 * W)

    # Pure-JAX f32 reference: nearest 2x upsample + 3x3 conv (padding=1) + bias.
    up = jnp.repeat(jnp.repeat(x, 2, axis=2), 2, axis=3)
    ref = lax.conv_general_dilated(
        up, weight, window_strides=(1, 1), padding=((1, 1), (1, 1)),
        dimension_numbers=("NCHW", "OIHW", "NCHW"),
    ) + bias.reshape(1, -1, 1, 1)

    # Kernel uses bf16 MXU inputs with f32 accumulation; tolerance sized for
    # bf16 input rounding (~2^-9 relative per operand over ~36 MACs/output,
    # observed max error ~1e-2).  Use compute_dtype=jnp.float32 for parity.
    err = float(jnp.max(jnp.abs(out - ref)))
    assert jnp.allclose(out, ref, atol=5e-2, rtol=5e-2), err
    print("KERNEL_OK")
</pallas_src>

<mosaic_0001>
module attributes {stable_mosaic.version = 11 : i64} {
  func.func @_upsample_conv3x3_kernel(%arg0: i32, %arg1: memref<16x64xbf16, #tpu.memory_space<vmem>>, %arg2: memref<64x384xbf16, #tpu.memory_space<any>>, %arg3: memref<3x32x16xbf16, #tpu.memory_space<any>>, %arg4: memref<1x128xf32, #tpu.memory_space<vmem>>, %arg5: memref<32x128xf32, #tpu.memory_space<vmem>>, %arg6: memref<64x384xbf16, #tpu.memory_space<vmem>>, %arg7: memref<3x32x16xbf16, #tpu.memory_space<vmem>>, %arg8: memref<2x!tpu.dma_semaphore, #tpu.memory_space<semaphore_mem>>) attributes {dimension_semantics = [#tpu.dimension_semantics<parallel>], iteration_bounds = array<i64: 2>, scalar_prefetch = 0 : i64, scratch_operands = 3 : i64, tpu.core_type = #tpu.core_type<tc>, window_params = [{transform_indices = @transform_0, window_bounds = array<i64: 16, 64>}, {}, {}, {pipeline_mode = #tpu.pipeline_mode<synchronous>, transform_indices = @transform_3, window_bounds = array<i64: 1, 128>}, {transform_indices = @transform_4, window_bounds = array<i64: 32, 128>}]} {
    %c0_i32 = arith.constant 0 : i32
    %0 = tpu.memref_slice %arg8[%c0_i32] : memref<2x!tpu.dma_semaphore, #tpu.memory_space<semaphore_mem>> -> memref<1x!tpu.dma_semaphore, #tpu.memory_space<semaphore_mem>>
    %1 = tpu.memref_squeeze %0 : memref<1x!tpu.dma_semaphore, #tpu.memory_space<semaphore_mem>> -> memref<!tpu.dma_semaphore, #tpu.memory_space<semaphore_mem>>
    tpu.enqueue_dma source(%arg2 : memref<64x384xbf16, #tpu.memory_space<any>>) target(%arg6 : memref<64x384xbf16, #tpu.memory_space<vmem>>) target_semaphore(%1 : memref<!tpu.dma_semaphore, #tpu.memory_space<semaphore_mem>>)
    %c1_i32 = arith.constant 1 : i32
    %2 = tpu.memref_slice %arg8[%c1_i32] : memref<2x!tpu.dma_semaphore, #tpu.memory_space<semaphore_mem>> -> memref<1x!tpu.dma_semaphore, #tpu.memory_space<semaphore_mem>>
    %3 = tpu.memref_squeeze %2 : memref<1x!tpu.dma_semaphore, #tpu.memory_space<semaphore_mem>> -> memref<!tpu.dma_semaphore, #tpu.memory_space<semaphore_mem>>
    tpu.enqueue_dma source(%arg3 : memref<3x32x16xbf16, #tpu.memory_space<any>>) target(%arg7 : memref<3x32x16xbf16, #tpu.memory_space<vmem>>) target_semaphore(%3 : memref<!tpu.dma_semaphore, #tpu.memory_space<semaphore_mem>>)
    %c0_i32_0 = arith.constant 0 : i32
    %4 = tpu.memref_slice %arg8[%c0_i32_0] : memref<2x!tpu.dma_semaphore, #tpu.memory_space<semaphore_mem>> -> memref<1x!tpu.dma_semaphore, #tpu.memory_space<semaphore_mem>>
    %5 = tpu.memref_squeeze %4 : memref<1x!tpu.dma_semaphore, #tpu.memory_space<semaphore_mem>> -> memref<!tpu.dma_semaphore, #tpu.memory_space<semaphore_mem>>
    tpu.wait_dma2 semaphore(%5 : memref<!tpu.dma_semaphore, #tpu.memory_space<semaphore_mem>>) src(%arg2 : memref<64x384xbf16, #tpu.memory_space<any>>) dst(%arg6 : memref<64x384xbf16, #tpu.memory_space<vmem>>)
    %c1_i32_1 = arith.constant 1 : i32
    %6 = tpu.memref_slice %arg8[%c1_i32_1] : memref<2x!tpu.dma_semaphore, #tpu.memory_space<semaphore_mem>> -> memref<1x!tpu.dma_semaphore, #tpu.memory_space<semaphore_mem>>
    %7 = tpu.memref_squeeze %6 : memref<1x!tpu.dma_semaphore, #tpu.memory_space<semaphore_mem>> -> memref<!tpu.dma_semaphore, #tpu.memory_space<semaphore_mem>>
    tpu.wait_dma2 semaphore(%7 : memref<!tpu.dma_semaphore, #tpu.memory_space<semaphore_mem>>) src(%arg3 : memref<3x32x16xbf16, #tpu.memory_space<any>>) dst(%arg7 : memref<3x32x16xbf16, #tpu.memory_space<vmem>>)
    %c0 = arith.constant 0 : index
    %c0_2 = arith.constant 0 : index
    %8 = vector.load %arg1[%c0, %c0_2] : memref<16x64xbf16, #tpu.memory_space<vmem>>, vector<16x64xbf16>
    %c0_3 = arith.constant 0 : index
    %c0_4 = arith.constant 0 : index
    %9 = vector.load %arg6[%c0_3, %c0_4] : memref<64x384xbf16, #tpu.memory_space<vmem>>, vector<64x384xbf16>
    %cst = arith.constant dense<0.000000e+00> : vector<16x384xf32>
    %10 = tpu.matmul %8, %9, %cst {dimension_numbers = #tpu.dot_dimension_numbers<[1], [0], [0], [1], [0, 0, 1, 1], [], []>} : vector<16x64xbf16>, vector<64x384xbf16>, vector<16x384xf32> -> vector<16x384xf32>
    %11 = arith.truncf %10 : vector<16x384xf32> to vector<16x384xbf16>
    %c0_5 = arith.constant 0 : index
    %c0_6 = arith.constant 0 : index
    %12 = vector.load %arg4[%c0_5, %c0_6] : memref<1x128xf32, #tpu.memory_space<vmem>>, vector<1x128xf32>
    %cst_7 = arith.constant 0.000000e+00 : f32
    %13 = vector.broadcast %cst_7 : f32 to vector<32x128xf32>
    %c0_8 = arith.constant 0 : index
    %c0_9 = arith.constant 0 : index
    %c0_10 = arith.constant 0 : index
    %14 = vector.load %arg7[%c0_8, %c0_9, %c0_10] : memref<3x32x16xbf16, #tpu.memory_space<vmem>>, vector<1x32x16xbf16>
    %15 = vector.shape_cast %14 : vector<1x32x16xbf16> to vector<32x16xbf16>
    %16 = vector.extract_strided_slice %11 {offsets = [0, 0], sizes = [16, 128], strides = [1, 1]} : vector<16x384xbf16> to vector<16x128xbf16>
    %cst_11 = arith.constant dense<0.000000e+00> : vector<32x128xf32>
    %17 = tpu.matmul %15, %16, %cst_11 {dimension_numbers = #tpu.dot_dimension_numbers<[1], [0], [0], [1], [0, 0, 1, 1], [], []>} : vector<32x16xbf16>, vector<16x128xbf16>, vector<32x128xf32> -> vector<32x128xf32>
    %18 = arith.addf %13, %17 : vector<32x128xf32>
    %c1 = arith.constant 1 : index
    %c0_12 = arith.constant 0 : index
    %c0_13 = arith.constant 0 : index
    %19 = vector.load %arg7[%c1, %c0_12, %c0_13] : memref<3x32x16xbf16, #tpu.memory_space<vmem>>, vector<1x32x16xbf16>
    %20 = vector.shape_cast %19 : vector<1x32x16xbf16> to vector<32x16xbf16>
    %21 = vector.extract_strided_slice %11 {offsets = [0, 128], sizes = [16, 128], strides = [1, 1]} : vector<16x384xbf16> to vector<16x128xbf16>
    %cst_14 = arith.constant dense<0.000000e+00> : vector<32x128xf32>
    %22 = tpu.matmul %20, %21, %cst_14 {dimension_numbers = #tpu.dot_dimension_numbers<[1], [0], [0], [1], [0, 0, 1, 1], [], []>} : vector<32x16xbf16>, vector<16x128xbf16>, vector<32x128xf32> -> vector<32x128xf32>
    %23 = arith.addf %18, %22 : vector<32x128xf32>
    %c2 = arith.constant 2 : index
    %c0_15 = arith.constant 0 : index
    %c0_16 = arith.constant 0 : index
    %24 = vector.load %arg7[%c2, %c0_15, %c0_16] : memref<3x32x16xbf16, #tpu.memory_space<vmem>>, vector<1x32x16xbf16>
    %25 = vector.shape_cast %24 : vector<1x32x16xbf16> to vector<32x16xbf16>
    %26 = vector.extract_strided_slice %11 {offsets = [0, 256], sizes = [16, 128], strides = [1, 1]} : vector<16x384xbf16> to vector<16x128xbf16>
    %cst_17 = arith.constant dense<0.000000e+00> : vector<32x128xf32>
    %27 = tpu.matmul %25, %26, %cst_17 {dimension_numbers = #tpu.dot_dimension_numbers<[1], [0], [0], [1], [0, 0, 1, 1], [], []>} : vector<32x16xbf16>, vector<16x128xbf16>, vector<32x128xf32> -> vector<32x128xf32>
    %28 = arith.addf %23, %27 : vector<32x128xf32>
    %29 = vector.broadcast %12 : vector<1x128xf32> to vector<32x128xf32>
    %30 = arith.addf %28, %29 : vector<32x128xf32>
    %c0_18 = arith.constant 0 : index
    %c0_19 = arith.constant 0 : index
    %31 = vector.load %arg5[%c0_18, %c0_19] : memref<32x128xf32, #tpu.memory_space<vmem>>, vector<32x128xf32>
    tpu.vector_store %arg5[%c0_18, %c0_19], %30 {strides = array<i32>} : memref<32x128xf32, #tpu.memory_space<vmem>>, vector<32x128xf32>,
    return
  }
  func.func @transform_0(%arg0: i32) -> (i32, i32) {
    %c0_i32 = arith.constant 0 : i32
    %c0_i32_0 = arith.constant 0 : i32
    return %arg0, %c0_i32 : i32, i32
  }
  func.func @transform_3(%arg0: i32) -> (i32, i32) {
    %c0_i32 = arith.constant 0 : i32
    %c0_i32_0 = arith.constant 0 : i32
    %c0_i32_1 = arith.constant 0 : i32
    return %c0_i32, %c0_i32_0 : i32, i32
  }
  func.func @transform_4(%arg0: i32) -> (i32, i32) {
    %c0_i32 = arith.constant 0 : i32
    %c0_i32_0 = arith.constant 0 : i32
    return %arg0, %c0_i32 : i32, i32
  }
}

</mosaic_0001>

<llo_original>
// kernel: upsample2d_forward.1
$region0: #{upsample2d_forward.1}
  #allocation0 [shape = 'u32[]', space=smem, size = 0x4, offset = 0x4, fixed_abs, tag = 'smem constant byte address 0x4 - core index']
  #allocation1 [shape = 'u32[72,128]{1,0:T(1,128)}', space=vmem, size = 0x9000, scoped, tag = 'internal scratch']
  #allocation2 [shape = 'bf16[64,384]{1,0:T(8,128)(2,1)}', space=vmem, size = 0xc000, scoped, tag = 'scratch operand']
  #allocation3 [shape = 'bf16[3,32,16]{2,1,0:T(8,128)(2,1)}', space=vmem, size = 0x6000, scoped, tag = 'scratch operand']
  #allocation4 [shape = 's32[2]{0}', space=sflag, size = 0x8, scoped, tag = 'scratch operand']
  #allocation5 [shape = 's32[]', space=sflag, size = 0x4, offset = 0, fixed_abs, tag = 'sflag constant byte address 0x0 - dummy sync flag']
  #allocation6 [shape = 's32[]', space=sflag, size = 0x4, offset = 0, fixed_abs, tag = 'sflag constant byte address 0x0 - dummy sync flag']
  %s0 = inlined_call_operand.vmem [shape: bf16[32,64], index: 0, kind: input, shape index: {}]
  %s1 = inlined_call_operand.vmem [shape: bf16[64,384], index: 1, kind: input, shape index: {}]
  %s2 = inlined_call_operand.vmem [shape: bf16[3,32,16], index: 2, kind: input, shape index: {}]
  %s3 = inlined_call_operand.vmem [shape: f32[1,128], index: 3, kind: input, shape index: {}]
  %s4 = inlined_call_operand.vmem [shape: f32[64,128], index: 4, kind: output, shape index: {}]
  %s5 = sld [smem:[#allocation0]]
  $region79: #{upsample2d_forward.1} parent=0
    _
  %s7 = ssub.s32 1, %s5
  %s8 = scalar_select 0, %s7, %s5
  loop: start=0, step=1, limit=4
  $region2: #{upsample2d_forward.1} parent=0 // loop_pre_header
    _
  $region3: #{upsample2d_forward.1} parent=0 // loop_header
    %s10 = sphi 0, %s14
    %p11 = scmp.ge.s32.totalorder %s10, 4
    %s20 = sphi 0, %s22
    %s23 = sphi 0, %s20
    %s24 = sphi 0, %s23
    %s40 = sphi 0, %s24
    %s44 = sphi 0, %s44
    %s46 = sphi 0, %s44
    %s47 = sphi 0, %s46
    %s61 = sphi 0, %s47
    %s67 = sphi 0, %s69
    %s70 = sphi 0, %s67
    %s71 = sphi 0, %s70
    %s87 = sphi 0, %s71
  $region4: #{upsample2d_forward.1} parent=0 // loop_header_branch
    %13 = sbr.rel (%p11) target = $region8
  $region5: #{upsample2d_forward.1} parent=0 // loop_body
    %s15 = ssub.s32 %s10, 1
    %s16 = ssub.s32 %s10, 2
    %s17 = sadd.s32 %s10, 1
    %s18 = ssub.s32 %s10, %s17
    %p19 = scmp.eq.s32.totalorder %s18, 0
    %s21 = sadd.s32 %s20, 1
    %s22 = scalar_select %p19, %s20, %s21
    %p25 = pneg %p19
    %p26 = scmp.eq.s32.totalorder %s10, 1
    %p27 = por %p25, %p26
    %p28 = scmp.ne.s32.totalorder %s20, %s23
    %p29 = scmp.eq.s32.totalorder %s10, 0
    %p30 = por %p28, %p29
    %p31 = scmp.ne.s32.totalorder %s20, %s23
    %p32 = scmp.eq.s32.totalorder %s15, 1
    %p33 = por %p31, %p32
    %p34 = scmp.ne.s32.totalorder %s23, %s24
    %p35 = scmp.eq.s32.totalorder %s15, 0
    %p36 = por %p34, %p35
    %p37 = scmp.ne.s32.totalorder %s23, %s24
    %p38 = scmp.eq.s32.totalorder %s16, 1
    %p39 = por %p37, %p38
    %p41 = scmp.ne.s32.totalorder %s24, %s40
    %p42 = scmp.eq.s32.totalorder %s16, 0
    %p43 = por %p41, %p42
    %s45 = sadd.s32 %s44, 1
    %p48 = scmp.eq.s32.totalorder %s10, 1
    %p49 = scmp.ne.s32.totalorder %s44, %s46
    %p50 = scmp.eq.s32.totalorder %s10, 0
    %p51 = por %p49, %p50
    %p52 = scmp.ne.s32.totalorder %s44, %s46
    %p53 = scmp.eq.s32.totalorder %s15, 1
    %p54 = por %p52, %p53
    %p55 = scmp.ne.s32.totalorder %s46, %s47
    %p56 = scmp.eq.s32.totalorder %s15, 0
    %p57 = por %p55, %p56
    %p58 = scmp.ne.s32.totalorder %s46, %s47
    %p59 = scmp.eq.s32.totalorder %s16, 1
    %p60 = por %p58, %p59
    %p62 = scmp.ne.s32.totalorder %s47, %s61
    %p63 = scmp.eq.s32.totalorder %s16, 0
    %p64 = por %p62, %p63
    %s65 = ssub.s32 %s10, %s17
    %p66 = scmp.eq.s32.totalorder %s65, 0
    %s68 = sadd.s32 %s67, 1
    %s69 = scalar_select %p66, %s67, %s68
    %p72 = pneg %p66
    %p73 = scmp.eq.s32.totalorder %s10, 1
    %p74 = por %p72, %p73
    %p75 = scmp.ne.s32.totalorder %s67, %s70
    %p76 = scmp.eq.s32.totalorder %s10, 0
    %p77 = por %p75, %p76
    %p78 = scmp.ne.s32.totalorder %s67, %s70
    %p79 = scmp.eq.s32.totalorder %s15, 1
    %p80 = por %p78, %p79
    %p81 = scmp.ne.s32.totalorder %s70, %s71
    %p82 = scmp.eq.s32.totalorder %s15, 0
    %p83 = por %p81, %p82
    %p84 = scmp.ne.s32.totalorder %s70, %s71
    %p85 = scmp.eq.s32.totalorder %s16, 1
    %p86 = por %p84, %p85
    %p88 = scmp.ne.s32.totalorder %s71, %s87
    %p89 = scmp.eq.s32.totalorder %s16, 0
    %p90 = por %p88, %p89
    %p91 = scmp.le.s32.totalorder 1, %s10
    %p92 = scmp.lt.s32.totalorder %s10, 3
    %p93 = pnand %p91, %p92
    %p94 = pneg %p93
    // Predicated region
    $region9: #{upsample2d_forward.1} parent=5 // pred_check
      _
    $region10: #{upsample2d_forward.1} parent=5 // pred_check_branch
      %96 = sbr.rel (%p93) target = $region12
    $region11: #{upsample2d_forward.1} parent=5 // pred_region
      %s97 = ssub.s32 %s10, 1
      // Predicated region
      $region13: #{upsample2d_forward.1} parent=11 // pred_check
        %p98 = pneg %p57
      $region14: #{upsample2d_forward.1} parent=11 // pred_check_branch
        %100 = sbr.rel (%p98) target = $region16
      $region15: #{upsample2d_forward.1} parent=11 // pred_region
        _
      $region16: #{upsample2d_forward.1} parent=11 // pred_fallthru
        _
    $region12: #{upsample2d_forward.1} parent=5 // pred_fallthru
      _
    %p101 = scmp.lt.s32.totalorder %s10, 2
    // Predicated region
    $region17: #{upsample2d_forward.1} parent=5 // pred_check
      %p102 = pneg %p101
    $region18: #{upsample2d_forward.1} parent=5 // pred_check_branch
      %104 = sbr.rel (%p102) target = $region20
    $region19: #{upsample2d_forward.1} parent=5 // pred_region
      // Predicated region
      $region21: #{upsample2d_forward.1} parent=19 // pred_check
        %p105 = pneg %p30
      $region22: #{upsample2d_forward.1} parent=19 // pred_check_branch
        %107 = sbr.rel (%p105) target = $region24
      $region23: #{upsample2d_forward.1} parent=19 // pred_region
        %s108 = smul.u32 2, %s10
        %p109 = scmp.lt.s32.totalorder %s108, 3
        %s110 = scalar_select %p109, %s108, 3
        %s111 = smul.addr %s110, 4
        %s112 = scalar_lea.vmem %s0, %s111
        %s113 = smul.u32 2, %s10
      $region24: #{upsample2d_forward.1} parent=19 // pred_fallthru
        _
    $region20: #{upsample2d_forward.1} parent=5 // pred_fallthru
      _
    %p114 = scmp.le.s32.totalorder 1, %s10
    %p115 = scmp.lt.s32.totalorder %s10, 3
    %p116 = pnand %p114, %p115
    %p117 = pneg %p116
    // Predicated region
    $region25: #{upsample2d_forward.1} parent=5 // pred_check
      _
    $region26: #{upsample2d_forward.1} parent=5 // pred_check_branch
      %119 = sbr.rel (%p116) target = $region28
    $region27: #{upsample2d_forward.1} parent=5 // pred_region
      %s120 = ssub.s32 %s10, 1
      %s121 = smul.u32 2, %s15
      %p122 = scmp.lt.s32.totalorder %s121, 3
      %s123 = scalar_select %p122, %s121, 3
      %s124 = smul.addr %s123, 4
      %s125 = scalar_lea.vmem %s0, %s124
      %p126 = pneg %p36
      %p127 = pneg %p33
      %p128 = pneg %p57
      %p129 = pneg %p54
      %p130 = pneg %p83
      %p131 = pneg %p80
      %s132 = smul.u32 4, %s15
      %p133 = scmp.lt.s32.totalorder %s132, 7
      %s134 = scalar_select %p133, %s132, 7
      %s135 = smul.addr %s134, 8
      %s136 = scalar_lea.vmem %s4, %s135
      %s137 = smul.u32 2, %s15
      %p138 = scmp.lt.s32.totalorder %s137, 3
      %s139 = scalar_select %p138, %s137, 3
      %s140 = smul.addr %s139, 4
      %s141 = scalar_lea.vmem %s0, %s140
      %s142 = smul.u32 2, %s15
      %s143 = smul.u32 4, %s15
      %p144 = scmp.lt.s32.totalorder %s143, 7
      %s145 = scalar_select %p144, %s143, 7
      %s146 = smul.addr %s145, 8
      %s147 = scalar_lea.vmem %s4, %s146
      %s148 = smul.u32 4, %s15
      // Predicated region
      $region29: #{upsample2d_forward.1} parent=27 // pred_check
        _
      $region30: #{upsample2d_forward.1} parent=27 // pred_check_branch
        %151 = sbr.rel (0) target = $region32
      $region31: #{upsample2d_forward.1} parent=27 // pred_region
        loop: start=0, step=1, limit=1
        $region33: #{upsample2d_forward.1} parent=31 // loop_pre_header
          _
        $region34: #{upsample2d_forward.1} parent=31 // loop_header
          %s153 = sphi 0, %s157
          %p154 = scmp.ge.s32.totalorder %s153, 1
          %s158 = sphi %s1, %s1
          %s159 = sphi [#allocation2], [#allocation2]
        $region35: #{upsample2d_forward.1} parent=31 // loop_header_branch
          %156 = sbr.rel (%p154) target = $region39
        $region36: #{upsample2d_forward.1} parent=31 // loop_body
          %v160 = vld [vmem:[%s158] sm:$0xff]
          %161 = vst [vmem:[%s159] sm:$0xff] %v160
          %v162 = vld [vmem:[%s158 + $0x8] sm:$0xff]
          %163 = vst [vmem:[%s159 + $0x8] sm:$0xff] %v162
          %v164 = vld [vmem:[%s158 + $0x10] sm:$0xff]
          %165 = vst [vmem:[%s159 + $0x10] sm:$0xff] %v164
          %v166 = vld [vmem:[%s158 + $0x18] sm:$0xff]
          %167 = vst [vmem:[%s159 + $0x18] sm:$0xff] %v166
          %v168 = vld [vmem:[%s158 + $0x20] sm:$0xff]
          %169 = vst [vmem:[%s159 + $0x20] sm:$0xff] %v168
          %v170 = vld [vmem:[%s158 + $0x28] sm:$0xff]
          %171 = vst [vmem:[%s159 + $0x28] sm:$0xff] %v170
          %v172 = vld [vmem:[%s158 + $0x30] sm:$0xff]
          %173 = vst [vmem:[%s159 + $0x30] sm:$0xff] %v172
          %v174 = vld [vmem:[%s158 + $0x38] sm:$0xff]
          %175 = vst [vmem:[%s159 + $0x38] sm:$0xff] %v174
          %v176 = vld [vmem:[%s158 + $0x40] sm:$0xff]
          %177 = vst [vmem:[%s159 + $0x40] sm:$0xff] %v176
          %v178 = vld [vmem:[%s158 + $0x48] sm:$0xff]
          %179 = vst [vmem:[%s159 + $0x48] sm:$0xff] %v178
          %v180 = vld [vmem:[%s158 + $0x50] sm:$0xff]
          %181 = vst [vmem:[%s159 + $0x50] sm:$0xff] %v180
          %v182 = vld [vmem:[%s158 + $0x58] sm:$0xff]
          %183 = vst [vmem:[%s159 + $0x58] sm:$0xff] %v182
        $region37: #{upsample2d_forward.1} parent=31 // loop_footer
          %s157 = sadd.s32 1, %s153
        $region38: #{upsample2d_forward.1} parent=31 // loop_footer_branch
          %152 = sbr.rel target = $region34
        $region39: #{upsample2d_forward.1} parent=31 // loop_exit
          _
      $region32: #{upsample2d_forward.1} parent=27 // pred_fallthru
        _
      // Predicated region
      $region40: #{upsample2d_forward.1} parent=27 // pred_check
        _
      $region41: #{upsample2d_forward.1} parent=27 // pred_check_branch
        %185 = sbr.rel target = $region43
      $region42: #{upsample2d_forward.1} parent=27 // pred_region
        _
      $region43: #{upsample2d_forward.1} parent=27 // pred_fallthru
        _
      // Predicated region
      $region44: #{upsample2d_forward.1} parent=27 // pred_check
        _
      $region45: #{upsample2d_forward.1} parent=27 // pred_check_branch
        %188 = sbr.rel (0) target = $region47
      $region46: #{upsample2d_forward.1} parent=27 // pred_region
        %189 = vsyncadd [#allocation4], 1536
      $region47: #{upsample2d_forward.1} parent=27 // pred_fallthru
        _
      %s190 = scalar_lea.sflag [#allocation4], 1
      // Predicated region
      $region48: #{upsample2d_forward.1} parent=27 // pred_check
        _
      $region49: #{upsample2d_forward.1} parent=27 // pred_check_branch
        %192 = sbr.rel (0) target = $region51
      $region50: #{upsample2d_forward.1} parent=27 // pred_region
        loop: start=0, step=1, limit=1
        $region52: #{upsample2d_forward.1} parent=50 // loop_pre_header
          _
        $region53: #{upsample2d_forward.1} parent=50 // loop_header
          %s194 = sphi 0, %s198
          %p195 = scmp.ge.s32.totalorder %s194, 1
          %s199 = sphi %s2, %s2
          %s200 = sphi [#allocation3], [#allocation3]
        $region54: #{upsample2d_forward.1} parent=50 // loop_header_branch
          %197 = sbr.rel (%p195) target = $region58
        $region55: #{upsample2d_forward.1} parent=50 // loop_body
          %v201 = vld [vmem:[%s199] sm:$0xff]
          %202 = vst [vmem:[%s200] sm:$0xff] %v201
          %v203 = vld [vmem:[%s199 + $0x8] sm:$0xff]
          %204 = vst [vmem:[%s200 + $0x8] sm:$0xff] %v203
          %v205 = vld [vmem:[%s199 + $0x10] sm:$0xff]
          %206 = vst [vmem:[%s200 + $0x10] sm:$0xff] %v205
          %v207 = vld [vmem:[%s199 + $0x18] sm:$0xff]
          %208 = vst [vmem:[%s200 + $0x18] sm:$0xff] %v207
          %v209 = vld [vmem:[%s199 + $0x20] sm:$0xff]
          %210 = vst [vmem:[%s200 + $0x20] sm:$0xff] %v209
          %v211 = vld [vmem:[%s199 + $0x28] sm:$0xff]
          %212 = vst [vmem:[%s200 + $0x28] sm:$0xff] %v211
        $region56: #{upsample2d_forward.1} parent=50 // loop_footer
          %s198 = sadd.s32 1, %s194
        $region57: #{upsample2d_forward.1} parent=50 // loop_footer_branch
          %193 = sbr.rel target = $region53
        $region58: #{upsample2d_forward.1} parent=50 // loop_exit
          _
      $region51: #{upsample2d_forward.1} parent=27 // pred_fallthru
        _
      // Predicated region
      $region59: #{upsample2d_forward.1} parent=27 // pred_check
        _
      $region60: #{upsample2d_forward.1} parent=27 // pred_check_branch
        %214 = sbr.rel target = $region62
      $region61: #{upsample2d_forward.1} parent=27 // pred_region
        _
      $region62: #{upsample2d_forward.1} parent=27 // pred_fallthru
        _
      // Predicated region
      $region63: #{upsample2d_forward.1} parent=27 // pred_check
        _
      $region64: #{upsample2d_forward.1} parent=27 // pred_check_branch
        %217 = sbr.rel (0) target = $region66
      $region65: #{upsample2d_forward.1} parent=27 // pred_region
        %218 = vsyncadd %s190, 768
      $region66: #{upsample2d_forward.1} parent=27 // pred_fallthru
        _
      %s219 = smul.u32 4, 8
      %s220 = smul.u32 %s219, 3
      %s221 = sshll.u32 %s220, 4
      %222 = dma.done [#allocation4], %s221
      %s223 = smul.u32 4, 3
      %s224 = smul.u32 %s223, 4
      %s225 = smul.u32 %s224, 1
      %s226 = sshll.u32 %s225, 4
      %227 = dma.done %s190, %s226
      %v228 = vld [vmem:[%s141] sm:$0xf]
      %v229 = vld [vmem:[%s141 + $0x4] sm:$0xf]
      %v230 = vld [vmem:[#allocation2] sm:$0xff]
      %v231 = vld [vmem:[#allocation2 + $0x8] sm:$0xf]
      %v232 = vld [vmem:[#allocation2 + $0xc] sm:$0xff]
      %v233 = vld [vmem:[#allocation2 + $0x14] sm:$0xf]
      %v234 = vld [vmem:[#allocation2 + $0x18] sm:$0xff]
      %v235 = vld [vmem:[#allocation2 + $0x20] sm:$0xf]
      %v236 = vld [vmem:[#allocation2 + $0x24] sm:$0xff]
      %v237 = vld [vmem:[#allocation2 + $0x2c] sm:$0xf]
      %v238 = vld [vmem:[#allocation2 + $0x30] sm:$0xff]
      %v239 = vld [vmem:[#allocation2 + $0x38] sm:$0xf]
      %v240 = vld [vmem:[#allocation2 + $0x3c] sm:$0xff]
      %v241 = vld [vmem:[#allocation2 + $0x44] sm:$0xf]
      %v242 = vld [vmem:[#allocation2 + $0x48] sm:$0xff]
      %v243 = vld [vmem:[#allocation2 + $0x50] sm:$0xf]
      %v244 = vld [vmem:[#allocation2 + $0x54] sm:$0xff]
      %v245 = vld [vmem:[#allocation2 + $0x5c] sm:$0xf]
      %v248 = vunpack.c.l.b16 %v228
      %v249 = vunpack.c.l.b16 %v229
      %v250 = vpack.c.b16 %v249, %v248
      %v267 = vunpack.c.l.b16 %v230
      %v268 = vunpack.c.h.b16 %v230
      %v269 = vunpack.c.l.b16 %v231
      %v270 = vunpack.c.l.b16 %v232
      %v271 = vunpack.c.h.b16 %v232
      %v272 = vunpack.c.l.b16 %v233
      %v273 = vunpack.c.l.b16 %v234
      %v274 = vunpack.c.h.b16 %v234
      %v275 = vunpack.c.l.b16 %v235
      %v276 = vunpack.c.l.b16 %v236
      %v277 = vunpack.c.h.b16 %v236
      %v278 = vunpack.c.l.b16 %v237
      %v279 = vunpack.c.l.b16 %v238
      %v280 = vunpack.c.h.b16 %v238
      %v281 = vunpack.c.l.b16 %v239
      %v282 = vunpack.c.l.b16 %v240
      %v283 = vunpack.c.h.b16 %v240
      %v284 = vunpack.c.l.b16 %v241
      %v285 = vunpack.c.l.b16 %v242
      %v286 = vunpack.c.h.b16 %v242
      %v287 = vunpack.c.l.b16 %v243
      %v288 = vunpack.c.l.b16 %v244
      %v289 = vunpack.c.h.b16 %v244
      %v290 = vunpack.c.l.b16 %v245
      %v291 = vpack.c.b16 %v270, %v267
      %v292 = vpack.c.b16 %v271, %v268
      %v293 = vpack.c.b16 %v272, %v269
      %v294 = vpack.c.b16 %v276, %v273
      %v295 = vpack.c.b16 %v277, %v274
      %v296 = vpack.c.b16 %v278, %v275
      %v297 = vpack.c.b16 %v282, %v279
      %v298 = vpack.c.b16 %v283, %v280
      %v299 = vpack.c.b16 %v284, %v281
      %v300 = vpack.c.b16 %v288, %v285
      %v301 = vpack.c.b16 %v289, %v286
      %v302 = vpack.c.b16 %v290, %v287
      %vm315 = vcmask 523264
      %v317 = vsel %vm315, %v250, 0
      %319 = vmatpush.bf16.msra.mxu0 0
      %320 = vmatpush.bf16.msra.mxu0 0
      %321 = vmatpush.bf16.msra.mxu0 0
      %322 = vmatpush.bf16.msra.mxu0 0
      %323 = vmatpush.bf16.msra.mxu0 %v300
      %324 = vmatpush.bf16.msra.mxu0 %v297
      %325 = vmatpush.bf16.msra.mxu0 %v294
      %326 = vmatpush.bf16.msra.mxu0 %v291
      %327 = vmatmul.bf16.gmra.mxu0 %v317
      %v328 = vpop.f32.mrf.mxu0
      %v329 = vadd.f32 0.0, %v328
      %v330 = vpop.f32.mrf.mxu0
      %v331 = vadd.f32 0.0, %v330
      %332 = vdwg.mxu0
      %333 = vmatpush.bf16.msra.mxu0 0
      %334 = vmatpush.bf16.msra.mxu0 0
      %335 = vmatpush.bf16.msra.mxu0 0
      %336 = vmatpush.bf16.msra.mxu0 0
      %337 = vmatpush.bf16.msra.mxu0 %v301
      %338 = vmatpush.bf16.msra.mxu0 %v298
      %339 = vmatpush.bf16.msra.mxu0 %v295
      %340 = vmatpush.bf16.msra.mxu0 %v292
      %341 = vmatmul.bf16.gmra.mxu0 %v317
      %v342 = vpop.f32.mrf.mxu0
      %v343 = vadd.f32 0.0, %v342
      %v344 = vpop.f32.mrf.mxu0
      %v345 = vadd.f32 0.0, %v344
      %346 = vdwg.mxu0
      %347 = vmatpush.bf16.msra.mxu0 0
      %348 = vmatpush.bf16.msra.mxu0 0
      %349 = vmatpush.bf16.msra.mxu0 0
      %350 = vmatpush.bf16.msra.mxu0 0
      %351 = vmatpush.bf16.msra.mxu0 %v302
      %352 = vmatpush.bf16.msra.mxu0 %v299
      %353 = vmatpush.bf16.msra.mxu0 %v296
      %354 = vmatpush.bf16.msra.mxu0 %v293
      %355 = vmatmul.bf16.gmra.mxu0 %v317
      %v356 = vpop.f32.mrf.mxu0
      %v357 = vadd.f32 0.0, %v356
      %v358 = vpop.f32.mrf.mxu0
      %v359 = vadd.f32 0.0, %v358
      %360 = vdwg.mxu0
      %v361 = vpack.c.bf16 %v343, %v329
      %v362 = vpack.c.bf16 %v357, %v357
      %v363 = vpack.c.bf16 %v345, %v331
      %v364 = vpack.c.bf16 %v359, %v359
      %v365 = vld [vmem:[%s3] sm:$0x1]
      %v366 = vld [vmem:[#allocation3] sm:$0xf]
      %v367 = vld [vmem:[#allocation3 + $0x4] sm:$0xf]
      %v368 = vld [vmem:[#allocation3 + $0x8] sm:$0xf]
      %v369 = vld [vmem:[#allocation3 + $0xc] sm:$0xf]
      %s370 = scalar_lea.vmem [#allocation3], 16
      %v371 = vld [vmem:[%s370] sm:$0xf]
      %v372 = vld [vmem:[%s370 + $0x4] sm:$0xf]
      %v373 = vld [vmem:[%s370 + $0x8] sm:$0xf]
      %v374 = vld [vmem:[%s370 + $0xc] sm:$0xf]
      %v379 = vunpack.c.l.b16 %v371
      %v380 = vunpack.c.l.b16 %v372
      %v381 = vunpack.c.l.b16 %v373
      %v382 = vunpack.c.l.b16 %v374
      %v383 = vpack.c.b16 %v380, %v379
      %v384 = vpack.c.b16 %v382, %v381
      %v387 = vunpack.c.h.b16 %v361
      %v388 = vunpack.c.h.b16 %v363
      %v389 = vpack.c.b16 %v388, %v387
      %vm391 = vcmask 130048
      %v393 = vsel %vm391, %v383, 0
      %v396 = vsel %vm391, %v384, 0
      %398 = vmatpush.bf16.msra.mxu0 0
      %399 = vmatpush.bf16.msra.mxu0 0
      %400 = vmatpush.bf16.msra.mxu0 0
      %401 = vmatpush.bf16.msra.mxu0 0
      %402 = vmatpush.bf16.msra.mxu0 0
      %403 = vmatpush.bf16.msra.mxu0 0
      %404 = vmatpush.bf16.msra.mxu0 0
      %405 = vmatpush.bf16.msra.mxu0 %v389
      %406 = vmatmul.bf16.gmra.mxu0 %v393
      %v407 = vpop.f32.mrf.mxu0
      %v408 = vadd.f32 0.0, %v407
      %v409 = vpop.f32.mrf.mxu0
      %v410 = vadd.f32 0.0, %v409
      %411 = vmatmul.bf16.gmra.mxu0 %v396
      %v412 = vpop.f32.mrf.mxu0
      %v413 = vadd.f32 0.0, %v412
      %v414 = vpop.f32.mrf.mxu0
      %v415 = vadd.f32 0.0, %v414
      %416 = vdwg.mxu0
      %v421 = vunpack.c.l.b16 %v366
      %v422 = vunpack.c.l.b16 %v367
      %v423 = vunpack.c.l.b16 %v368
      %v424 = vunpack.c.l.b16 %v369
      %v425 = vpack.c.b16 %v422, %v421
      %v426 = vpack.c.b16 %v424, %v423
      %v427 = vunpack.c.l.b16 %v361
      %v428 = vunpack.c.l.b16 %v363
      %v429 = vpack.c.b16 %v428, %v427
      %v432 = vsel %vm391, %v425, 0
      %v435 = vsel %vm391, %v426, 0
      %437 = vmatpush.bf16.msra.mxu0 0
      %438 = vmatpush.bf16.msra.mxu0 0
      %439 = vmatpush.bf16.msra.mxu0 0
      %440 = vmatpush.bf16.msra.mxu0 0
      %441 = vmatpush.bf16.msra.mxu0 0
      %442 = vmatpush.bf16.msra.mxu0 0
      %443 = vmatpush.bf16.msra.mxu0 0
      %444 = vmatpush.bf16.msra.mxu0 %v429
      %445 = vmatmul.bf16.gmra.mxu0 %v432
      %v446 = vpop.f32.mrf.mxu0
      %v447 = vadd.f32 %v408, %v446
      %v448 = vpop.f32.mrf.mxu0
      %v449 = vadd.f32 %v410, %v448
      %450 = vmatmul.bf16.gmra.mxu0 %v435
      %v451 = vpop.f32.mrf.mxu0
      %v452 = vadd.f32 %v413, %v451
      %v453 = vpop.f32.mrf.mxu0
      %v454 = vadd.f32 %v415, %v453
      %455 = vdwg.mxu0
      %s456 = scalar_lea.vmem [#allocation3], 32
      %v457 = vld [vmem:[%s456] sm:$0xf]
      %v458 = vld [vmem:[%s456 + $0x4] sm:$0xf]
      %v459 = vld [vmem:[%s456 + $0x8] sm:$0xf]
      %v460 = vld [vmem:[%s456 + $0xc] sm:$0xf]
      %v465 = vunpack.c.l.b16 %v457
      %v466 = vunpack.c.l.b16 %v458
      %v467 = vunpack.c.l.b16 %v459
      %v468 = vunpack.c.l.b16 %v460
      %v469 = vpack.c.b16 %v466, %v465
      %v470 = vpack.c.b16 %v468, %v467
      %v473 = vunpack.c.l.b16 %v362
      %v474 = vunpack.c.l.b16 %v364
      %v475 = vpack.c.b16 %v474, %v473
      %v478 = vsel %vm391, %v469, 0
      %v481 = vsel %vm391, %v470, 0
      %483 = vmatpush.bf16.msra.mxu0 0
      %484 = vmatpush.bf16.msra.mxu0 0
      %485 = vmatpush.bf16.msra.mxu0 0
      %486 = vmatpush.bf16.msra.mxu0 0
      %487 = vmatpush.bf16.msra.mxu0 0
      %488 = vmatpush.bf16.msra.mxu0 0
      %489 = vmatpush.bf16.msra.mxu0 0
      %490 = vmatpush.bf16.msra.mxu0 %v475
      %491 = vmatmul.bf16.gmra.mxu0 %v478
      %v492 = vpop.f32.mrf.mxu0
      %v493 = vadd.f32 0.0, %v492
      %v494 = vpop.f32.mrf.mxu0
      %v495 = vadd.f32 0.0, %v494
      %496 = vmatmul.bf16.gmra.mxu0 %v481
      %v497 = vpop.f32.mrf.mxu0
      %v498 = vadd.f32 0.0, %v497
      %v499 = vpop.f32.mrf.mxu0
      %v500 = vadd.f32 0.0, %v499
      %501 = vdwg.mxu0
      %v502 = vadd.f32 %v447, %v493
      %v503 = vadd.f32 %v449, %v495
      %v504 = vadd.f32 %v452, %v498
      %v505 = vadd.f32 %v454, %v500
      %v507 = vperm.slane %v365, 0
      %v509 = vadd.f32 %v502, %v507
      %v510 = vadd.f32 %v503, %v507
      %v511 = vadd.f32 %v504, %v507
      %v512 = vadd.f32 %v505, %v507
      %513 = vst [vmem:[%s147] sm:$0xff] %v509
      %514 = vst [vmem:[%s147 + $0x8] sm:$0xff] %v510
      %515 = vst [vmem:[%s147 + $0x10] sm:$0xff] %v511
      %516 = vst [vmem:[%s147 + $0x18] sm:$0xff] %v512
      %s517 = smul.u32 4, %s15
      %p518 = scmp.lt.s32.totalorder %s517, 7
      %s519 = scalar_select %p518, %s517, 7
      %s520 = smul.addr %s519, 8
      %s521 = scalar_lea.vmem %s4, %s520
      // Predicated region
      $region67: #{upsample2d_forward.1} parent=27 // pred_check
        %p522 = pneg %p80
      $region68: #{upsample2d_forward.1} parent=27 // pred_check_branch
        %524 = sbr.rel (%p522) target = $region70
      $region69: #{upsample2d_forward.1} parent=27 // pred_region
        %s525 = smul.u32 4, %s15
      $region70: #{upsample2d_forward.1} parent=27 // pred_fallthru
        _
    $region28: #{upsample2d_forward.1} parent=5 // pred_fallthru
      _
    %p526 = scmp.le.s32.totalorder 2, %s10
    // Predicated region
    $region71: #{upsample2d_forward.1} parent=5 // pred_check
      %p527 = pneg %p526
    $region72: #{upsample2d_forward.1} parent=5 // pred_check_branch
      %529 = sbr.rel (%p527) target = $region74
    $region73: #{upsample2d_forward.1} parent=5 // pred_region
      %s530 = ssub.s32 %s10, 2
      // Predicated region
      $region75: #{upsample2d_forward.1} parent=73 // pred_check
        %p531 = pneg %p86
      $region76: #{upsample2d_forward.1} parent=73 // pred_check_branch
        %533 = sbr.rel (%p531) target = $region78
      $region77: #{upsample2d_forward.1} parent=73 // pred_region
        %s534 = smul.u32 4, %s16
        %p535 = scmp.lt.s32.totalorder %s534, 7
        %s536 = scalar_select %p535, %s534, 7
        %s537 = smul.addr %s536, 8
        %s538 = scalar_lea.vmem %s4, %s537
      $region78: #{upsample2d_forward.1} parent=73 // pred_fallthru
        _
    $region74: #{upsample2d_forward.1} parent=5 // pred_fallthru
      _
  $region6: #{upsample2d_forward.1} parent=0 // loop_footer
    %s14 = sadd.s32 1, %s10
  $region7: #{upsample2d_forward.1} parent=0 // loop_footer_branch
    %9 = sbr.rel target = $region3
  $region8: #{upsample2d_forward.1} parent=0 // loop_exit
    _
  %539 = vsyncmov [#allocation4]
  %s540 = vpop.sfrf %539
  %p541 = scmp.eq.s32.totalorder %s540, 0
  %p542 = pneg %p541
  %544 = shalt.err (%p542)
  %s545 = scalar_lea.sflag [#allocation4], 1
  %546 = vsyncmov %s545
  %s547 = vpop.sfrf %546
  %p548 = scmp.eq.s32.totalorder %s547, 0
  %p549 = pneg %p548
  %551 = shalt.err (%p549)

</llo_original>
